<compile_context>
chip_gen: v7x
topology: tpu7x:2x2x1
jax: 0.10.0
libtpu: 0.0.40
codegen_flags: <defaults>
</compile_context>

<pallas_src>
import jax
import jax.numpy as jnp
from jax.experimental import pallas as pl
from jax.experimental.pallas import tpu as pltpu

D_IN = 8
D_OUT = 4
GROUP = 16                      # batch rows packed per 128-lane row (16*8 = 128)
LANES_IN = GROUP * D_IN         # 128
LANES_OUT = GROUP * D_OUT       # 64


def _cdiv(a, b):
    return -(-a // b)


def _beta_extractor_kernel(x_ref, w_ref, b_ref, o_ref):
    # x_ref: VMEM (tr, 128)  — 16 batch rows per sublane row, lane-dense
    # w_ref: VMEM (128, 64)  — block-diagonal kron(I_16, W), resident
    # b_ref: VMEM (1, 64)    — bias tiled 16x
    # o_ref: VMEM (tr, 64)   — softplus(x @ Wblk + b), lane-dense
    z = jnp.dot(x_ref[...], w_ref[...],
                preferred_element_type=jnp.float32,
                precision=jax.lax.Precision.HIGHEST) + b_ref[...]
    # numerically stable softplus, computed once on the full dense tile
    o_ref[...] = jnp.maximum(z, 0.0) + jnp.log1p(jnp.exp(-jnp.abs(z)))


def beta_extractor(latent, weight, bias, *, tr=4096):
    """latent: (B, 8) f32; weight: (8, 4) f32 in (in, out) layout (i.e. the
    transpose of PyTorch nn.Linear's (out, in) storage); bias: (4,) f32."""
    B, d_in = latent.shape
    assert d_in == D_IN
    assert weight.shape == (D_IN, D_OUT)
    assert bias.shape == (D_OUT,)

    # Rows of the lane-dense view (16 batch rows per 128-lane row).
    rows = _cdiv(B, GROUP)
    if rows <= 8:
        # Single small tile; block == full array, so no (8,128) divisibility needed.
        tr_eff = rows
        rows_pad = rows
    else:
        # Keep >= 2 grid steps (v7x megacore) when there is enough work,
        # sublane-align the tile, and pad rows up to a whole number of tiles.
        tr_eff = min(tr, _cdiv(rows, 2))
        tr_eff = _cdiv(tr_eff, 8) * 8
        rows_pad = _cdiv(rows, tr_eff) * tr_eff
    b_pad = rows_pad * GROUP

    x = latent
    if b_pad != B:
        x = jnp.pad(x, ((0, b_pad - B), (0, 0)))            # contiguous tail pad only
    x = x.reshape(rows_pad, LANES_IN)                        # free row-major reshape

    # Block-diagonal replicated weight (128, 64) and tiled bias (1, 64).
    w_block = jnp.kron(jnp.eye(GROUP, dtype=weight.dtype), weight)
    b_block = jnp.tile(bias, GROUP).reshape(1, LANES_OUT)

    out = pl.pallas_call(
        _beta_extractor_kernel,
        out_shape=jax.ShapeDtypeStruct((rows_pad, LANES_OUT), jnp.float32),
        grid_spec=pltpu.PrefetchScalarGridSpec(
            num_scalar_prefetch=0,
            grid=(rows_pad // tr_eff,),
            in_specs=[
                pl.BlockSpec((tr_eff, LANES_IN), lambda i: (i, 0)),    # latent tile
                pl.BlockSpec((LANES_IN, LANES_OUT), lambda i: (0, 0)),  # weight (resident)
                pl.BlockSpec((1, LANES_OUT), lambda i: (0, 0)),         # bias (resident)
            ],
            out_specs=pl.BlockSpec((tr_eff, LANES_OUT), lambda i: (i, 0)),
        ),
        compiler_params=pltpu.CompilerParams(
            # batch axis is embarrassingly parallel -> v7x shards over 2 TCs;
            # no-op on single-TC v5e/v6e.
            dimension_semantics=("parallel",),
        ),
    )(x, w_block, b_block)

    params = out.reshape(b_pad, D_OUT)[:B]                   # free reshape + tail slice
    return {
        ("params", "strength", "concentration0"): params[:, :2],
        ("params", "strength", "concentration1"): params[:, 2:],
    }


def _check(latent, weight, bias):
    out = beta_extractor(latent, weight, bias)
    jax.block_until_ready(out)
    sp_ref = jax.nn.softplus(latent @ weight + bias)
    assert jnp.allclose(out[("params", "strength", "concentration0")],
                        sp_ref[:, :2], atol=1e-5)
    assert jnp.allclose(out[("params", "strength", "concentration1")],
                        sp_ref[:, 2:], atol=1e-5)


if __name__ == "__main__":
    key = jax.random.PRNGKey(0)
    k_x, k_w, k_b, k_x2 = jax.random.split(key, 4)

    # Deterministic parameter init (mimics nn.Linear's uniform(-1/sqrt(8), 1/sqrt(8))),
    # stored in (in, out) layout.
    bound = 1.0 / jnp.sqrt(8.0)
    weight = jax.random.uniform(k_w, (D_IN, D_OUT), jnp.float32, -bound, bound)
    bias = jax.random.uniform(k_b, (D_OUT,), jnp.float32, -bound, bound)

    # Small batch (single-tile path, B not a multiple of 16).
    latent_small = jax.random.normal(k_x, (8, D_IN), jnp.float32)
    _check(latent_small, weight, bias)

    # Slightly larger batch (exercises padding + 2-step grid path).
    latent_big = jax.random.normal(k_x2, (200, D_IN), jnp.float32)
    _check(latent_big, weight, bias)

    print("KERNEL_OK")
</pallas_src>

<mosaic_0001>
module attributes {stable_mosaic.version = 11 : i64} {
  func.func @_beta_extractor_kernel(%arg0: i32, %arg1: memref<1x128xf32, #tpu.memory_space<vmem>>, %arg2: memref<128x64xf32, #tpu.memory_space<vmem>>, %arg3: memref<1x64xf32, #tpu.memory_space<vmem>>, %arg4: memref<1x64xf32, #tpu.memory_space<vmem>>) attributes {dimension_semantics = [#tpu.dimension_semantics<parallel>], iteration_bounds = array<i64: 1>, scalar_prefetch = 0 : i64, scratch_operands = 0 : i64, tpu.core_type = #tpu.core_type<tc>, window_params = [{transform_indices = @transform_0, window_bounds = array<i64: 1, 128>}, {pipeline_mode = #tpu.pipeline_mode<synchronous>, transform_indices = @transform_1, window_bounds = array<i64: 128, 64>}, {pipeline_mode = #tpu.pipeline_mode<synchronous>, transform_indices = @transform_2, window_bounds = array<i64: 1, 64>}, {transform_indices = @transform_3, window_bounds = array<i64: 1, 64>}]} {
    %c0 = arith.constant 0 : index
    %c0_0 = arith.constant 0 : index
    %0 = vector.load %arg1[%c0, %c0_0] : memref<1x128xf32, #tpu.memory_space<vmem>>, vector<1x128xf32>
    %c0_1 = arith.constant 0 : index
    %c0_2 = arith.constant 0 : index
    %1 = vector.load %arg2[%c0_1, %c0_2] : memref<128x64xf32, #tpu.memory_space<vmem>>, vector<128x64xf32>
    %cst = arith.constant dense<0.000000e+00> : vector<1x64xf32>
    %2 = tpu.matmul %0, %1, %cst {dimension_numbers = #tpu.dot_dimension_numbers<[1], [0], [0], [1], [0, 0, 1, 1], [], []>, precision = #tpu.contract_precision<fp32>} : vector<1x128xf32>, vector<128x64xf32>, vector<1x64xf32> -> vector<1x64xf32>
    %c0_3 = arith.constant 0 : index
    %c0_4 = arith.constant 0 : index
    %3 = vector.load %arg3[%c0_3, %c0_4] : memref<1x64xf32, #tpu.memory_space<vmem>>, vector<1x64xf32>
    %4 = arith.addf %2, %3 : vector<1x64xf32>
    %cst_5 = arith.constant 0.000000e+00 : f32
    %5 = vector.broadcast %cst_5 : f32 to vector<1x64xf32>
    %6 = arith.maximumf %4, %5 : vector<1x64xf32>
    %7 = math.absf %4 : vector<1x64xf32>
    %cst_6 = arith.constant 0.000000e+00 : f32
    %8 = vector.broadcast %cst_6 : f32 to vector<1x64xf32>
    %9 = arith.subf %8, %7 : vector<1x64xf32>
    %10 = math.exp %9 : vector<1x64xf32>
    %11 = math.log1p %10 : vector<1x64xf32>
    %12 = arith.addf %6, %11 : vector<1x64xf32>
    %c0_7 = arith.constant 0 : index
    %c0_8 = arith.constant 0 : index
    %13 = vector.load %arg4[%c0_7, %c0_8] : memref<1x64xf32, #tpu.memory_space<vmem>>, vector<1x64xf32>
    tpu.vector_store %arg4[%c0_7, %c0_8], %12 {strides = array<i32>} : memref<1x64xf32, #tpu.memory_space<vmem>>, vector<1x64xf32>,
    return
  }
  func.func @transform_0(%arg0: i32) -> (i32, i32) {
    %c0_i32 = arith.constant 0 : i32
    %c0_i32_0 = arith.constant 0 : i32
    return %arg0, %c0_i32 : i32, i32
  }
  func.func @transform_1(%arg0: i32) -> (i32, i32) {
    %c0_i32 = arith.constant 0 : i32
    %c0_i32_0 = arith.constant 0 : i32
    %c0_i32_1 = arith.constant 0 : i32
    return %c0_i32, %c0_i32_0 : i32, i32
  }
  func.func @transform_2(%arg0: i32) -> (i32, i32) {
    %c0_i32 = arith.constant 0 : i32
    %c0_i32_0 = arith.constant 0 : i32
    %c0_i32_1 = arith.constant 0 : i32
    return %c0_i32, %c0_i32_0 : i32, i32
  }
  func.func @transform_3(%arg0: i32) -> (i32, i32) {
    %c0_i32 = arith.constant 0 : i32
    %c0_i32_0 = arith.constant 0 : i32
    return %arg0, %c0_i32 : i32, i32
  }
}

</mosaic_0001>

<llo_original>
// kernel: tpu_custom_call.1
$region0: #{tpu_custom_call.1}
  #allocation0 [shape = 'u32[]', space=smem, size = 0x4, offset = 0x4, fixed_abs, tag = 'smem constant byte address 0x4 - core index']
  #allocation1 [shape = 'u32[144,128]{1,0:T(1,128)}', space=vmem, size = 0x12000, scoped, tag = 'internal scratch']
  %s0 = inlined_call_operand.vmem [shape: f32[1,128], index: 0, kind: input, shape index: {}]
  %s1 = inlined_call_operand.vmem [shape: f32[128,64], index: 1, kind: input, shape index: {}]
  %s2 = inlined_call_operand.vmem [shape: f32[1,64], index: 2, kind: input, shape index: {}]
  %s3 = inlined_call_operand.hbm [shape: f32[1,64], index: 3, kind: output, shape index: {}]
  %s4 = sld [smem:[#allocation0]]
  $region22: #{tpu_custom_call.1} parent=0
    _
  %s6 = ssub.s32 1, %s4
  %s7 = scalar_select 0, %s6, %s4
  $region1: #{tpu_custom_call.1} parent=0
    #allocation2 [shape = 'u8[512]{0}', space=vmem, size = 0x400, scoped, tag = 'output window, operand 0, single buffered']
    #allocation3 [shape = 's32[1]{0}', space=sflag, size = 0x4, scoped, tag = 'scoped memory for tpu_custom_call.1']
    %8 = vsyncpa [#allocation3], 0
    // Predicated region
    $region2: #{tpu_custom_call.1} parent=1 // pred_check
      _
    $region3: #{tpu_custom_call.1} parent=1 // pred_check_branch
      %10 = sbr.rel (0) target = $region5
    $region4: #{tpu_custom_call.1} parent=1 // pred_region
      _
    $region5: #{tpu_custom_call.1} parent=1 // pred_fallthru
      _
    // Predicated region
    $region6: #{tpu_custom_call.1} parent=1 // pred_check
      _
    $region7: #{tpu_custom_call.1} parent=1 // pred_check_branch
      %12 = sbr.rel (0) target = $region9
    $region8: #{tpu_custom_call.1} parent=1 // pred_region
      _
    $region9: #{tpu_custom_call.1} parent=1 // pred_fallthru
      _
    // Predicated region
    $region10: #{tpu_custom_call.1} parent=1 // pred_check
      _
    $region11: #{tpu_custom_call.1} parent=1 // pred_check_branch
      %14 = sbr.rel (0) target = $region13
    $region12: #{tpu_custom_call.1} parent=1 // pred_region
      _
    $region13: #{tpu_custom_call.1} parent=1 // pred_fallthru
      _
    %v15 = vld [vmem:[%s0] sm:$0x1]
    %v16 = vld [vmem:[%s1] sm:$0xff]
    %v17 = vld [vmem:[%s1 + $0x8] sm:$0xff]
    %v18 = vld [vmem:[%s1 + $0x10] sm:$0xff]
    %v19 = vld [vmem:[%s1 + $0x18] sm:$0xff]
    %v20 = vld [vmem:[%s1 + $0x20] sm:$0xff]
    %v21 = vld [vmem:[%s1 + $0x28] sm:$0xff]
    %v22 = vld [vmem:[%s1 + $0x30] sm:$0xff]
    %v23 = vld [vmem:[%s1 + $0x38] sm:$0xff]
    %v24 = vld [vmem:[%s1 + $0x40] sm:$0xff]
    %v25 = vld [vmem:[%s1 + $0x48] sm:$0xff]
    %v26 = vld [vmem:[%s1 + $0x50] sm:$0xff]
    %v27 = vld [vmem:[%s1 + $0x58] sm:$0xff]
    %v28 = vld [vmem:[%s1 + $0x60] sm:$0xff]
    %v29 = vld [vmem:[%s1 + $0x68] sm:$0xff]
    %v30 = vld [vmem:[%s1 + $0x70] sm:$0xff]
    %v31 = vld [vmem:[%s1 + $0x78] sm:$0xff]
    %v32 = vld [vmem:[%s2] sm:$0x1]
    %33 = vmatprep.subr.mxu0 0.0
    %v34 = vand.u32 %v16, 4294901760
    %35 = vmatpush1.msra.mxu0 %v34
    %36 = vmatprep.subr.mxu0 0.0
    %v37 = vand.u32 %v17, 4294901760
    %38 = vmatpush1.msra.mxu0 %v37
    %39 = vmatprep.subr.mxu0 0.0
    %v40 = vand.u32 %v18, 4294901760
    %41 = vmatpush1.msra.mxu0 %v40
    %42 = vmatprep.subr.mxu0 0.0
    %v43 = vand.u32 %v19, 4294901760
    %44 = vmatpush1.msra.mxu0 %v43
    %45 = vmatprep.subr.mxu0 0.0
    %v46 = vand.u32 %v20, 4294901760
    %47 = vmatpush1.msra.mxu0 %v46
    %48 = vmatprep.subr.mxu0 0.0
    %v49 = vand.u32 %v21, 4294901760
    %50 = vmatpush1.msra.mxu0 %v49
    %51 = vmatprep.subr.mxu0 0.0
    %v52 = vand.u32 %v22, 4294901760
    %53 = vmatpush1.msra.mxu0 %v52
    %54 = vmatprep.subr.mxu0 0.0
    %v55 = vand.u32 %v23, 4294901760
    %56 = vmatpush1.msra.mxu0 %v55
    %57 = vmatprep.subr.mxu0 0.0
    %v58 = vand.u32 %v24, 4294901760
    %59 = vmatpush1.msra.mxu0 %v58
    %60 = vmatprep.subr.mxu0 0.0
    %v61 = vand.u32 %v25, 4294901760
    %62 = vmatpush1.msra.mxu0 %v61
    %63 = vmatprep.subr.mxu0 0.0
    %v64 = vand.u32 %v26, 4294901760
    %65 = vmatpush1.msra.mxu0 %v64
    %66 = vmatprep.subr.mxu0 0.0
    %v67 = vand.u32 %v27, 4294901760
    %68 = vmatpush1.msra.mxu0 %v67
    %69 = vmatprep.subr.mxu0 0.0
    %v70 = vand.u32 %v28, 4294901760
    %71 = vmatpush1.msra.mxu0 %v70
    %72 = vmatprep.subr.mxu0 0.0
    %v73 = vand.u32 %v29, 4294901760
    %74 = vmatpush1.msra.mxu0 %v73
    %75 = vmatprep.subr.mxu0 0.0
    %v76 = vand.u32 %v30, 4294901760
    %77 = vmatpush1.msra.mxu0 %v76
    %78 = vmatprep.subr.mxu0 0.0
    %v79 = vand.u32 %v31, 4294901760
    %80 = vmatpush1.msra.mxu0 %v79
    %81 = vmatprep.subr.mxu0 0.0
    %82 = vmatpush1.msra.mxu0 0.0
    %83 = vmatprep.subr.mxu0 0.0
    %84 = vmatpush1.msra.mxu0 0.0
    %85 = vmatprep.subr.mxu0 0.0
    %86 = vmatpush1.msra.mxu0 0.0
    %87 = vmatprep.subr.mxu0 0.0
    %88 = vmatpush1.msra.mxu0 0.0
    %89 = vmatprep.subr.mxu0 0.0
    %90 = vmatpush1.msra.mxu0 0.0
    %91 = vmatprep.subr.mxu0 0.0
    %92 = vmatpush1.msra.mxu0 0.0
    %93 = vmatprep.subr.mxu0 0.0
    %94 = vmatpush1.msra.mxu0 0.0
    %95 = vmatprep.subr.mxu0 0.0
    %96 = vmatpush1.msra.mxu0 0.0
    %97 = vmatprep.subr.mxu0 0.0
    %98 = vmatpush1.msra.mxu0 0.0
    %99 = vmatprep.subr.mxu0 0.0
    %100 = vmatpush1.msra.mxu0 0.0
    %101 = vmatprep.subr.mxu0 0.0
    %102 = vmatpush1.msra.mxu0 0.0
    %103 = vmatprep.subr.mxu0 0.0
    %104 = vmatpush1.msra.mxu0 0.0
    %105 = vmatprep.subr.mxu0 0.0
    %106 = vmatpush1.msra.mxu0 0.0
    %107 = vmatprep.subr.mxu0 0.0
    %108 = vmatpush1.msra.mxu0 0.0
    %109 = vmatprep.subr.mxu0 0.0
    %110 = vmatpush1.msra.mxu0 0.0
    %111 = vmatprep.subr.mxu0 0.0
    %112 = vmatpush1.msra.mxu0 0.0
    %113 = vmatprep.mubr.f32.mxu0 0.0
    %v114 = vand.u32 %v15, 4294901760
    %v115 = vsub.f32 %v15, %v114
    %v116 = vand.u32 %v115, 4294901760
    %v117 = vsub.f32 %v115, %v116
    %v118 = vand.u32 %v117, 4294901760
    %119 = vmatmul.mubr.f32.gmra.mrb[0].mxu0 %v118
    %v120 = vpop.f32.mrb[0].mxu0
    %v121 = vadd.f32 %v32, %v120
    %v122 = vpop.f32.mrb[0].mxu0
    %123 = vdwg.mxu0
    %124 = vmatprep.subr.mxu0 0.0
    %v125 = vand.u32 %v16, 4294901760
    %v126 = vsub.f32 %v16, %v125
    %v127 = vand.u32 %v126, 4294901760
    %v128 = vsub.f32 %v126, %v127
    %v129 = vand.u32 %v128, 4294901760
    %130 = vmatpush1.msra.mxu0 %v129
    %131 = vmatprep.subr.mxu0 0.0
    %v132 = vand.u32 %v17, 4294901760
    %v133 = vsub.f32 %v17, %v132
    %v134 = vand.u32 %v133, 4294901760
    %v135 = vsub.f32 %v133, %v134
    %v136 = vand.u32 %v135, 4294901760
    %137 = vmatpush1.msra.mxu0 %v136
    %138 = vmatprep.subr.mxu0 0.0
    %v139 = vand.u32 %v18, 4294901760
    %v140 = vsub.f32 %v18, %v139
    %v141 = vand.u32 %v140, 4294901760
    %v142 = vsub.f32 %v140, %v141
    %v143 = vand.u32 %v142, 4294901760
    %144 = vmatpush1.msra.mxu0 %v143
    %145 = vmatprep.subr.mxu0 0.0
    %v146 = vand.u32 %v19, 4294901760
    %v147 = vsub.f32 %v19, %v146
    %v148 = vand.u32 %v147, 4294901760
    %v149 = vsub.f32 %v147, %v148
    %v150 = vand.u32 %v149, 4294901760
    %151 = vmatpush1.msra.mxu0 %v150
    %152 = vmatprep.subr.mxu0 0.0
    %v153 = vand.u32 %v20, 4294901760
    %v154 = vsub.f32 %v20, %v153
    %v155 = vand.u32 %v154, 4294901760
    %v156 = vsub.f32 %v154, %v155
    %v157 = vand.u32 %v156, 4294901760
    %158 = vmatpush1.msra.mxu0 %v157
    %159 = vmatprep.subr.mxu0 0.0
    %v160 = vand.u32 %v21, 4294901760
    %v161 = vsub.f32 %v21, %v160
    %v162 = vand.u32 %v161, 4294901760
    %v163 = vsub.f32 %v161, %v162
    %v164 = vand.u32 %v163, 4294901760
    %165 = vmatpush1.msra.mxu0 %v164
    %166 = vmatprep.subr.mxu0 0.0
    %v167 = vand.u32 %v22, 4294901760
    %v168 = vsub.f32 %v22, %v167
    %v169 = vand.u32 %v168, 4294901760
    %v170 = vsub.f32 %v168, %v169
    %v171 = vand.u32 %v170, 4294901760
    %172 = vmatpush1.msra.mxu0 %v171
    %173 = vmatprep.subr.mxu0 0.0
    %v174 = vand.u32 %v23, 4294901760
    %v175 = vsub.f32 %v23, %v174
    %v176 = vand.u32 %v175, 4294901760
    %v177 = vsub.f32 %v175, %v176
    %v178 = vand.u32 %v177, 4294901760
    %179 = vmatpush1.msra.mxu0 %v178
    %180 = vmatprep.subr.mxu0 0.0
    %v181 = vand.u32 %v24, 4294901760
    %v182 = vsub.f32 %v24, %v181
    %v183 = vand.u32 %v182, 4294901760
    %v184 = vsub.f32 %v182, %v183
    %v185 = vand.u32 %v184, 4294901760
    %186 = vmatpush1.msra.mxu0 %v185
    %187 = vmatprep.subr.mxu0 0.0
    %v188 = vand.u32 %v25, 4294901760
    %v189 = vsub.f32 %v25, %v188
    %v190 = vand.u32 %v189, 4294901760
    %v191 = vsub.f32 %v189, %v190
    %v192 = vand.u32 %v191, 4294901760
    %193 = vmatpush1.msra.mxu0 %v192
    %194 = vmatprep.subr.mxu0 0.0
    %v195 = vand.u32 %v26, 4294901760
    %v196 = vsub.f32 %v26, %v195
    %v197 = vand.u32 %v196, 4294901760
    %v198 = vsub.f32 %v196, %v197
    %v199 = vand.u32 %v198, 4294901760
    %200 = vmatpush1.msra.mxu0 %v199
    %201 = vmatprep.subr.mxu0 0.0
    %v202 = vand.u32 %v27, 4294901760
    %v203 = vsub.f32 %v27, %v202
    %v204 = vand.u32 %v203, 4294901760
    %v205 = vsub.f32 %v203, %v204
    %v206 = vand.u32 %v205, 4294901760
    %207 = vmatpush1.msra.mxu0 %v206
    %208 = vmatprep.subr.mxu0 0.0
    %v209 = vand.u32 %v28, 4294901760
    %v210 = vsub.f32 %v28, %v209
    %v211 = vand.u32 %v210, 4294901760
    %v212 = vsub.f32 %v210, %v211
    %v213 = vand.u32 %v212, 4294901760
    %214 = vmatpush1.msra.mxu0 %v213
    %215 = vmatprep.subr.mxu0 0.0
    %v216 = vand.u32 %v29, 4294901760
    %v217 = vsub.f32 %v29, %v216
    %v218 = vand.u32 %v217, 4294901760
    %v219 = vsub.f32 %v217, %v218
    %v220 = vand.u32 %v219, 4294901760
    %221 = vmatpush1.msra.mxu0 %v220
    %222 = vmatprep.subr.mxu0 0.0
    %v223 = vand.u32 %v30, 4294901760
    %v224 = vsub.f32 %v30, %v223
    %v225 = vand.u32 %v224, 4294901760
    %v226 = vsub.f32 %v224, %v225
    %v227 = vand.u32 %v226, 4294901760
    %228 = vmatpush1.msra.mxu0 %v227
    %229 = vmatprep.subr.mxu0 0.0
    %v230 = vand.u32 %v31, 4294901760
    %v231 = vsub.f32 %v31, %v230
    %v232 = vand.u32 %v231, 4294901760
    %v233 = vsub.f32 %v231, %v232
    %v234 = vand.u32 %v233, 4294901760
    %235 = vmatpush1.msra.mxu0 %v234
    %236 = vmatprep.subr.mxu0 0.0
    %237 = vmatpush1.msra.mxu0 0.0
    %238 = vmatprep.subr.mxu0 0.0
    %239 = vmatpush1.msra.mxu0 0.0
    %240 = vmatprep.subr.mxu0 0.0
    %241 = vmatpush1.msra.mxu0 0.0
    %242 = vmatprep.subr.mxu0 0.0
    %243 = vmatpush1.msra.mxu0 0.0
    %244 = vmatprep.subr.mxu0 0.0
    %245 = vmatpush1.msra.mxu0 0.0
    %246 = vmatprep.subr.mxu0 0.0
    %247 = vmatpush1.msra.mxu0 0.0
    %248 = vmatprep.subr.mxu0 0.0
    %249 = vmatpush1.msra.mxu0 0.0
    %250 = vmatprep.subr.mxu0 0.0
    %251 = vmatpush1.msra.mxu0 0.0
    %252 = vmatprep.subr.mxu0 0.0
    %253 = vmatpush1.msra.mxu0 0.0
    %254 = vmatprep.subr.mxu0 0.0
    %255 = vmatpush1.msra.mxu0 0.0
    %256 = vmatprep.subr.mxu0 0.0
    %257 = vmatpush1.msra.mxu0 0.0
    %258 = vmatprep.subr.mxu0 0.0
    %259 = vmatpush1.msra.mxu0 0.0
    %260 = vmatprep.subr.mxu0 0.0
    %261 = vmatpush1.msra.mxu0 0.0
    %262 = vmatprep.subr.mxu0 0.0
    %263 = vmatpush1.msra.mxu0 0.0
    %264 = vmatprep.subr.mxu0 0.0
    %265 = vmatpush1.msra.mxu0 0.0
    %266 = vmatprep.subr.mxu0 0.0
    %267 = vmatpush1.msra.mxu0 0.0
    %268 = vmatprep.mubr.f32.mxu0 0.0
    %v269 = vand.u32 %v15, 4294901760
    %270 = vmatmul.mubr.f32.gmra.mrb[0].mxu0 %v269
    %v271 = vpop.f32.mrb[0].mxu0
    %v272 = vadd.f32 %v121, %v271
    %v273 = vpop.f32.mrb[0].mxu0
    %274 = vdwg.mxu0
    %275 = vmatprep.subr.mxu0 0.0
    %v276 = vand.u32 %v16, 4294901760
    %v277 = vsub.f32 %v16, %v276
    %278 = vmatpush1.msra.mxu0 %v277
    %279 = vmatprep.subr.mxu0 0.0
    %v280 = vand.u32 %v17, 4294901760
    %v281 = vsub.f32 %v17, %v280
    %282 = vmatpush1.msra.mxu0 %v281
    %283 = vmatprep.subr.mxu0 0.0
    %v284 = vand.u32 %v18, 4294901760
    %v285 = vsub.f32 %v18, %v284
    %286 = vmatpush1.msra.mxu0 %v285
    %287 = vmatprep.subr.mxu0 0.0
    %v288 = vand.u32 %v19, 4294901760
    %v289 = vsub.f32 %v19, %v288
    %290 = vmatpush1.msra.mxu0 %v289
    %291 = vmatprep.subr.mxu0 0.0
    %v292 = vand.u32 %v20, 4294901760
    %v293 = vsub.f32 %v20, %v292
    %294 = vmatpush1.msra.mxu0 %v293
    %295 = vmatprep.subr.mxu0 0.0
    %v296 = vand.u32 %v21, 4294901760
    %v297 = vsub.f32 %v21, %v296
    %298 = vmatpush1.msra.mxu0 %v297
    %299 = vmatprep.subr.mxu0 0.0
    %v300 = vand.u32 %v22, 4294901760
    %v301 = vsub.f32 %v22, %v300
    %302 = vmatpush1.msra.mxu0 %v301
    %303 = vmatprep.subr.mxu0 0.0
    %v304 = vand.u32 %v23, 4294901760
    %v305 = vsub.f32 %v23, %v304
    %306 = vmatpush1.msra.mxu0 %v305
    %307 = vmatprep.subr.mxu0 0.0
    %v308 = vand.u32 %v24, 4294901760
    %v309 = vsub.f32 %v24, %v308
    %310 = vmatpush1.msra.mxu0 %v309
    %311 = vmatprep.subr.mxu0 0.0
    %v312 = vand.u32 %v25, 4294901760
    %v313 = vsub.f32 %v25, %v312
    %314 = vmatpush1.msra.mxu0 %v313
    %315 = vmatprep.subr.mxu0 0.0
    %v316 = vand.u32 %v26, 4294901760
    %v317 = vsub.f32 %v26, %v316
    %318 = vmatpush1.msra.mxu0 %v317
    %319 = vmatprep.subr.mxu0 0.0
    %v320 = vand.u32 %v27, 4294901760
    %v321 = vsub.f32 %v27, %v320
    %322 = vmatpush1.msra.mxu0 %v321
    %323 = vmatprep.subr.mxu0 0.0
    %v324 = vand.u32 %v28, 4294901760
    %v325 = vsub.f32 %v28, %v324
    %326 = vmatpush1.msra.mxu0 %v325
    %327 = vmatprep.subr.mxu0 0.0
    %v328 = vand.u32 %v29, 4294901760
    %v329 = vsub.f32 %v29, %v328
    %330 = vmatpush1.msra.mxu0 %v329
    %331 = vmatprep.subr.mxu0 0.0
    %v332 = vand.u32 %v30, 4294901760
    %v333 = vsub.f32 %v30, %v332
    %334 = vmatpush1.msra.mxu0 %v333
    %335 = vmatprep.subr.mxu0 0.0
    %v336 = vand.u32 %v31, 4294901760
    %v337 = vsub.f32 %v31, %v336
    %338 = vmatpush1.msra.mxu0 %v337
    %339 = vmatprep.subr.mxu0 0.0
    %340 = vmatpush1.msra.mxu0 0.0
    %341 = vmatprep.subr.mxu0 0.0
    %342 = vmatpush1.msra.mxu0 0.0
    %343 = vmatprep.subr.mxu0 0.0
    %344 = vmatpush1.msra.mxu0 0.0
    %345 = vmatprep.subr.mxu0 0.0
    %346 = vmatpush1.msra.mxu0 0.0
    %347 = vmatprep.subr.mxu0 0.0
    %348 = vmatpush1.msra.mxu0 0.0
    %349 = vmatprep.subr.mxu0 0.0
    %350 = vmatpush1.msra.mxu0 0.0
    %351 = vmatprep.subr.mxu0 0.0
    %352 = vmatpush1.msra.mxu0 0.0
    %353 = vmatprep.subr.mxu0 0.0
    %354 = vmatpush1.msra.mxu0 0.0
    %355 = vmatprep.subr.mxu0 0.0
    %356 = vmatpush1.msra.mxu0 0.0
    %357 = vmatprep.subr.mxu0 0.0
    %358 = vmatpush1.msra.mxu0 0.0
    %359 = vmatprep.subr.mxu0 0.0
    %360 = vmatpush1.msra.mxu0 0.0
    %361 = vmatprep.subr.mxu0 0.0
    %362 = vmatpush1.msra.mxu0 0.0
    %363 = vmatprep.subr.mxu0 0.0
    %364 = vmatpush1.msra.mxu0 0.0
    %365 = vmatprep.subr.mxu0 0.0
    %366 = vmatpush1.msra.mxu0 0.0
    %367 = vmatprep.subr.mxu0 0.0
    %368 = vmatpush1.msra.mxu0 0.0
    %369 = vmatprep.subr.mxu0 0.0
    %370 = vmatpush1.msra.mxu0 0.0
    %371 = vmatprep.mubr.f32.mxu0 0.0
    %v372 = vand.u32 %v15, 4294901760
    %v373 = vsub.f32 %v15, %v372
    %374 = vmatmul.mubr.f32.gmra.mrb[0].mxu0 %v373
    %v375 = vpop.f32.mrb[0].mxu0
    %v376 = vadd.f32 %v272, %v375
    %v377 = vpop.f32.mrb[0].mxu0
    %378 = vdwg.mxu0
    %379 = vmatprep.subr.mxu0 0.0
    %v380 = vand.u32 %v16, 4294901760
    %381 = vmatpush1.msra.mxu0 %v380
    %382 = vmatprep.subr.mxu0 0.0
    %v383 = vand.u32 %v17, 4294901760
    %384 = vmatpush1.msra.mxu0 %v383
    %385 = vmatprep.subr.mxu0 0.0
    %v386 = vand.u32 %v18, 4294901760
    %387 = vmatpush1.msra.mxu0 %v386
    %388 = vmatprep.subr.mxu0 0.0
    %v389 = vand.u32 %v19, 4294901760
    %390 = vmatpush1.msra.mxu0 %v389
    %391 = vmatprep.subr.mxu0 0.0
    %v392 = vand.u32 %v20, 4294901760
    %393 = vmatpush1.msra.mxu0 %v392
    %394 = vmatprep.subr.mxu0 0.0
    %v395 = vand.u32 %v21, 4294901760
    %396 = vmatpush1.msra.mxu0 %v395
    %397 = vmatprep.subr.mxu0 0.0
    %v398 = vand.u32 %v22, 4294901760
    %399 = vmatpush1.msra.mxu0 %v398
    %400 = vmatprep.subr.mxu0 0.0
    %v401 = vand.u32 %v23, 4294901760
    %402 = vmatpush1.msra.mxu0 %v401
    %403 = vmatprep.subr.mxu0 0.0
    %v404 = vand.u32 %v24, 4294901760
    %405 = vmatpush1.msra.mxu0 %v404
    %406 = vmatprep.subr.mxu0 0.0
    %v407 = vand.u32 %v25, 4294901760
    %408 = vmatpush1.msra.mxu0 %v407
    %409 = vmatprep.subr.mxu0 0.0
    %v410 = vand.u32 %v26, 4294901760
    %411 = vmatpush1.msra.mxu0 %v410
    %412 = vmatprep.subr.mxu0 0.0
    %v413 = vand.u32 %v27, 4294901760
    %414 = vmatpush1.msra.mxu0 %v413
    %415 = vmatprep.subr.mxu0 0.0
    %v416 = vand.u32 %v28, 4294901760
    %417 = vmatpush1.msra.mxu0 %v416
    %418 = vmatprep.subr.mxu0 0.0
    %v419 = vand.u32 %v29, 4294901760
    %420 = vmatpush1.msra.mxu0 %v419
    %421 = vmatprep.subr.mxu0 0.0
    %v422 = vand.u32 %v30, 4294901760
    %423 = vmatpush1.msra.mxu0 %v422
    %424 = vmatprep.subr.mxu0 0.0
    %v425 = vand.u32 %v31, 4294901760
    %426 = vmatpush1.msra.mxu0 %v425
    %427 = vmatprep.subr.mxu0 0.0
    %428 = vmatpush1.msra.mxu0 0.0
    %429 = vmatprep.subr.mxu0 0.0
    %430 = vmatpush1.msra.mxu0 0.0
    %431 = vmatprep.subr.mxu0 0.0
    %432 = vmatpush1.msra.mxu0 0.0
    %433 = vmatprep.subr.mxu0 0.0
    %434 = vmatpush1.msra.mxu0 0.0
    %435 = vmatprep.subr.mxu0 0.0
    %436 = vmatpush1.msra.mxu0 0.0
    %437 = vmatprep.subr.mxu0 0.0
    %438 = vmatpush1.msra.mxu0 0.0
    %439 = vmatprep.subr.mxu0 0.0
    %440 = vmatpush1.msra.mxu0 0.0
    %441 = vmatprep.subr.mxu0 0.0
    %442 = vmatpush1.msra.mxu0 0.0
    %443 = vmatprep.subr.mxu0 0.0
    %444 = vmatpush1.msra.mxu0 0.0
    %445 = vmatprep.subr.mxu0 0.0
    %446 = vmatpush1.msra.mxu0 0.0
    %447 = vmatprep.subr.mxu0 0.0
    %448 = vmatpush1.msra.mxu0 0.0
    %449 = vmatprep.subr.mxu0 0.0
    %450 = vmatpush1.msra.mxu0 0.0
    %451 = vmatprep.subr.mxu0 0.0
    %452 = vmatpush1.msra.mxu0 0.0
    %453 = vmatprep.subr.mxu0 0.0
    %454 = vmatpush1.msra.mxu0 0.0
    %455 = vmatprep.subr.mxu0 0.0
    %456 = vmatpush1.msra.mxu0 0.0
    %457 = vmatprep.subr.mxu0 0.0
    %458 = vmatpush1.msra.mxu0 0.0
    %459 = vmatprep.mubr.f32.mxu0 0.0
    %v460 = vand.u32 %v15, 4294901760
    %v461 = vsub.f32 %v15, %v460
    %v462 = vand.u32 %v461, 4294901760
    %463 = vmatmul.mubr.f32.gmra.mrb[0].mxu0 %v462
    %v464 = vpop.f32.mrb[0].mxu0
    %v465 = vadd.f32 %v376, %v464
    %v466 = vpop.f32.mrb[0].mxu0
    %467 = vdwg.mxu0
    %468 = vmatprep.subr.mxu0 0.0
    %v469 = vand.u32 %v16, 4294901760
    %v470 = vsub.f32 %v16, %v469
    %v471 = vand.u32 %v470, 4294901760
    %472 = vmatpush1.msra.mxu0 %v471
    %473 = vmatprep.subr.mxu0 0.0
    %v474 = vand.u32 %v17, 4294901760
    %v475 = vsub.f32 %v17, %v474
    %v476 = vand.u32 %v475, 4294901760
    %477 = vmatpush1.msra.mxu0 %v476
    %478 = vmatprep.subr.mxu0 0.0
    %v479 = vand.u32 %v18, 4294901760
    %v480 = vsub.f32 %v18, %v479
    %v481 = vand.u32 %v480, 4294901760
    %482 = vmatpush1.msra.mxu0 %v481
    %483 = vmatprep.subr.mxu0 0.0
    %v484 = vand.u32 %v19, 4294901760
    %v485 = vsub.f32 %v19, %v484
    %v486 = vand.u32 %v485, 4294901760
    %487 = vmatpush1.msra.mxu0 %v486
    %488 = vmatprep.subr.mxu0 0.0
    %v489 = vand.u32 %v20, 4294901760
    %v490 = vsub.f32 %v20, %v489
    %v491 = vand.u32 %v490, 4294901760
    %492 = vmatpush1.msra.mxu0 %v491
    %493 = vmatprep.subr.mxu0 0.0
    %v494 = vand.u32 %v21, 4294901760
    %v495 = vsub.f32 %v21, %v494
    %v496 = vand.u32 %v495, 4294901760
    %497 = vmatpush1.msra.mxu0 %v496
    %498 = vmatprep.subr.mxu0 0.0
    %v499 = vand.u32 %v22, 4294901760
    %v500 = vsub.f32 %v22, %v499
    %v501 = vand.u32 %v500, 4294901760
    %502 = vmatpush1.msra.mxu0 %v501
    %503 = vmatprep.subr.mxu0 0.0
    %v504 = vand.u32 %v23, 4294901760
    %v505 = vsub.f32 %v23, %v504
    %v506 = vand.u32 %v505, 4294901760
    %507 = vmatpush1.msra.mxu0 %v506
    %508 = vmatprep.subr.mxu0 0.0
    %v509 = vand.u32 %v24, 4294901760
    %v510 = vsub.f32 %v24, %v509
    %v511 = vand.u32 %v510, 4294901760
    %512 = vmatpush1.msra.mxu0 %v511
    %513 = vmatprep.subr.mxu0 0.0
    %v514 = vand.u32 %v25, 4294901760
    %v515 = vsub.f32 %v25, %v514
    %v516 = vand.u32 %v515, 4294901760
    %517 = vmatpush1.msra.mxu0 %v516
    %518 = vmatprep.subr.mxu0 0.0
    %v519 = vand.u32 %v26, 4294901760
    %v520 = vsub.f32 %v26, %v519
    %v521 = vand.u32 %v520, 4294901760
    %522 = vmatpush1.msra.mxu0 %v521
    %523 = vmatprep.subr.mxu0 0.0
    %v524 = vand.u32 %v27, 4294901760
    %v525 = vsub.f32 %v27, %v524
    %v526 = vand.u32 %v525, 4294901760
    %527 = vmatpush1.msra.mxu0 %v526
    %528 = vmatprep.subr.mxu0 0.0
    %v529 = vand.u32 %v28, 4294901760
    %v530 = vsub.f32 %v28, %v529
    %v531 = vand.u32 %v530, 4294901760
    %532 = vmatpush1.msra.mxu0 %v531
    %533 = vmatprep.subr.mxu0 0.0
    %v534 = vand.u32 %v29, 4294901760
    %v535 = vsub.f32 %v29, %v534
    %v536 = vand.u32 %v535, 4294901760
    %537 = vmatpush1.msra.mxu0 %v536
    %538 = vmatprep.subr.mxu0 0.0
    %v539 = vand.u32 %v30, 4294901760
    %v540 = vsub.f32 %v30, %v539
    %v541 = vand.u32 %v540, 4294901760
    %542 = vmatpush1.msra.mxu0 %v541
    %543 = vmatprep.subr.mxu0 0.0
    %v544 = vand.u32 %v31, 4294901760
    %v545 = vsub.f32 %v31, %v544
    %v546 = vand.u32 %v545, 4294901760
    %547 = vmatpush1.msra.mxu0 %v546
    %548 = vmatprep.subr.mxu0 0.0
    %549 = vmatpush1.msra.mxu0 0.0
    %550 = vmatprep.subr.mxu0 0.0
    %551 = vmatpush1.msra.mxu0 0.0
    %552 = vmatprep.subr.mxu0 0.0
    %553 = vmatpush1.msra.mxu0 0.0
    %554 = vmatprep.subr.mxu0 0.0
    %555 = vmatpush1.msra.mxu0 0.0
    %556 = vmatprep.subr.mxu0 0.0
    %557 = vmatpush1.msra.mxu0 0.0
    %558 = vmatprep.subr.mxu0 0.0
    %559 = vmatpush1.msra.mxu0 0.0
    %560 = vmatprep.subr.mxu0 0.0
    %561 = vmatpush1.msra.mxu0 0.0
    %562 = vmatprep.subr.mxu0 0.0
    %563 = vmatpush1.msra.mxu0 0.0
    %564 = vmatprep.subr.mxu0 0.0
    %565 = vmatpush1.msra.mxu0 0.0
    %566 = vmatprep.subr.mxu0 0.0
    %567 = vmatpush1.msra.mxu0 0.0
    %568 = vmatprep.subr.mxu0 0.0
    %569 = vmatpush1.msra.mxu0 0.0
    %570 = vmatprep.subr.mxu0 0.0
    %571 = vmatpush1.msra.mxu0 0.0
    %572 = vmatprep.subr.mxu0 0.0
    %573 = vmatpush1.msra.mxu0 0.0
    %574 = vmatprep.subr.mxu0 0.0
    %575 = vmatpush1.msra.mxu0 0.0
    %576 = vmatprep.subr.mxu0 0.0
    %577 = vmatpush1.msra.mxu0 0.0
    %578 = vmatprep.subr.mxu0 0.0
    %579 = vmatpush1.msra.mxu0 0.0
    %580 = vmatprep.mubr.f32.mxu0 0.0
    %v581 = vand.u32 %v15, 4294901760
    %582 = vmatmul.mubr.f32.gmra.mrb[0].mxu0 %v581
    %v583 = vpop.f32.mrb[0].mxu0
    %v584 = vadd.f32 %v465, %v583
    %v585 = vpop.f32.mrb[0].mxu0
    %586 = vdwg.mxu0
    %587 = vmatprep.subr.mxu0 0.0
    %v588 = vand.u32 %v16, 4294901760
    %589 = vmatpush1.msra.mxu0 %v588
    %590 = vmatprep.subr.mxu0 0.0
    %v591 = vand.u32 %v17, 4294901760
    %592 = vmatpush1.msra.mxu0 %v591
    %593 = vmatprep.subr.mxu0 0.0
    %v594 = vand.u32 %v18, 4294901760
    %595 = vmatpush1.msra.mxu0 %v594
    %596 = vmatprep.subr.mxu0 0.0
    %v597 = vand.u32 %v19, 4294901760
    %598 = vmatpush1.msra.mxu0 %v597
    %599 = vmatprep.subr.mxu0 0.0
    %v600 = vand.u32 %v20, 4294901760
    %601 = vmatpush1.msra.mxu0 %v600
    %602 = vmatprep.subr.mxu0 0.0
    %v603 = vand.u32 %v21, 4294901760
    %604 = vmatpush1.msra.mxu0 %v603
    %605 = vmatprep.subr.mxu0 0.0
    %v606 = vand.u32 %v22, 4294901760
    %607 = vmatpush1.msra.mxu0 %v606
    %608 = vmatprep.subr.mxu0 0.0
    %v609 = vand.u32 %v23, 4294901760
    %610 = vmatpush1.msra.mxu0 %v609
    %611 = vmatprep.subr.mxu0 0.0
    %v612 = vand.u32 %v24, 4294901760
    %613 = vmatpush1.msra.mxu0 %v612
    %614 = vmatprep.subr.mxu0 0.0
    %v615 = vand.u32 %v25, 4294901760
    %616 = vmatpush1.msra.mxu0 %v615
    %617 = vmatprep.subr.mxu0 0.0
    %v618 = vand.u32 %v26, 4294901760
    %619 = vmatpush1.msra.mxu0 %v618
    %620 = vmatprep.subr.mxu0 0.0
    %v621 = vand.u32 %v27, 4294901760
    %622 = vmatpush1.msra.mxu0 %v621
    %623 = vmatprep.subr.mxu0 0.0
    %v624 = vand.u32 %v28, 4294901760
    %625 = vmatpush1.msra.mxu0 %v624
    %626 = vmatprep.subr.mxu0 0.0
    %v627 = vand.u32 %v29, 4294901760
    %628 = vmatpush1.msra.mxu0 %v627
    %629 = vmatprep.subr.mxu0 0.0
    %v630 = vand.u32 %v30, 4294901760
    %631 = vmatpush1.msra.mxu0 %v630
    %632 = vmatprep.subr.mxu0 0.0
    %v633 = vand.u32 %v31, 4294901760
    %634 = vmatpush1.msra.mxu0 %v633
    %635 = vmatprep.subr.mxu0 0.0
    %636 = vmatpush1.msra.mxu0 0.0
    %637 = vmatprep.subr.mxu0 0.0
    %638 = vmatpush1.msra.mxu0 0.0
    %639 = vmatprep.subr.mxu0 0.0
    %640 = vmatpush1.msra.mxu0 0.0
    %641 = vmatprep.subr.mxu0 0.0
    %642 = vmatpush1.msra.mxu0 0.0
    %643 = vmatprep.subr.mxu0 0.0
    %644 = vmatpush1.msra.mxu0 0.0
    %645 = vmatprep.subr.mxu0 0.0
    %646 = vmatpush1.msra.mxu0 0.0
    %647 = vmatprep.subr.mxu0 0.0
    %648 = vmatpush1.msra.mxu0 0.0
    %649 = vmatprep.subr.mxu0 0.0
    %650 = vmatpush1.msra.mxu0 0.0
    %651 = vmatprep.subr.mxu0 0.0
    %652 = vmatpush1.msra.mxu0 0.0
    %653 = vmatprep.subr.mxu0 0.0
    %654 = vmatpush1.msra.mxu0 0.0
    %655 = vmatprep.subr.mxu0 0.0
    %656 = vmatpush1.msra.mxu0 0.0
    %657 = vmatprep.subr.mxu0 0.0
    %658 = vmatpush1.msra.mxu0 0.0
    %659 = vmatprep.subr.mxu0 0.0
    %660 = vmatpush1.msra.mxu0 0.0
    %661 = vmatprep.subr.mxu0 0.0
    %662 = vmatpush1.msra.mxu0 0.0
    %663 = vmatprep.subr.mxu0 0.0
    %664 = vmatpush1.msra.mxu0 0.0
    %665 = vmatprep.subr.mxu0 0.0
    %666 = vmatpush1.msra.mxu0 0.0
    %667 = vmatprep.mubr.f32.mxu0 0.0
    %v668 = vand.u32 %v15, 4294901760
    %669 = vmatmul.mubr.f32.gmra.mrb[0].mxu0 %v668
    %v670 = vpop.f32.mrb[0].mxu0
    %v671 = vadd.f32 %v584, %v670
    %v672 = vpop.f32.mrb[0].mxu0
    %673 = vdwg.mxu0
    %v674 = vmax.f32 %v671, 0.0
    %v675 = vand.u32 2147483647, %v671
    %v676 = vsub.f32 0.0, %v675
    %v677 = vmul.f32 %v676, 1.442695
    %v678 = vpow.pop %v677
    %v679 = vadd.f32 %v678, 1.0
    %v680 = vlog2.pop %v679
    %v681 = vmul.f32 %v680, 0.6931472
    %v682 = vmul.f32 -0.5, %v678
    %v683 = vadd.f32 %v682, 1.0
    %v684 = vmul.f32 %v683, %v678
    %v685 = vand.u32 2147483647, %v678
    %vm686 = vcmp.lt.f32.partialorder %v685, 0.0004427343
    %v687 = vsel %vm686, %v684, %v681
    %v688 = vadd.f32 %v674, %v687
    %vm689 = vcmask 516096
    %690 = vst.msk [vmem:[#allocation2] sm:$0x1] %vm689, %v688
    // Predicated region
    $region14: #{tpu_custom_call.1} parent=1 // pred_check
      _
    $region15: #{tpu_custom_call.1} parent=1 // pred_check_branch
      %692 = sbr.rel (0) target = $region17
    $region16: #{tpu_custom_call.1} parent=1 // pred_region
      %s694 = ssub.s32 16, 16
      %695 = vsyncadd [#allocation3], %s694
      %s697 = sshll.u32 [#allocation2], 4
      %s698 = int_to_ptr.vmem [resolvable:$true] %s697
      %700 = dma.vmem_to_hbm [thread:$0]  %s698, 16, %s3, [#allocation3]
    $region17: #{tpu_custom_call.1} parent=1 // pred_fallthru
      _
    // Predicated region
    $region18: #{tpu_custom_call.1} parent=1 // pred_check
      _
    $region19: #{tpu_custom_call.1} parent=1 // pred_check_branch
      %702 = sbr.rel (0) target = $region21
    $region20: #{tpu_custom_call.1} parent=1 // pred_region
      %703 = dma.done [#allocation3], 16
    $region21: #{tpu_custom_call.1} parent=1 // pred_fallthru
      _
    %704 = vsyncpa [#allocation3], 1

</llo_original>
